<compile_context>
chip_gen: v7x
topology: tpu7x:2x2x1
jax: 0.10.0
libtpu: 0.0.40
codegen_flags: <defaults>
</compile_context>

<pallas_src>
import jax
import jax.numpy as jnp
from jax.experimental import pallas as pl
from jax.experimental.pallas import tpu as pltpu


# ----------------------------- kernels ---------------------------------------


def _se_kernel_nchw(x_ref, w1t_ref, b1_ref, w2t_ref, b2_ref, o_ref):
    # x_ref: (B, C, HW)  w1t_ref: (C, Cr)  b1_ref: (1, Cr)
    # w2t_ref: (Cr, C)   b2_ref: (1, C)    o_ref: (B, C, HW)
    hw = x_ref.shape[-1]

    # Global average pool over the flattened spatial (lane) axis -> (B, C), f32.
    pooled = jnp.sum(x_ref[...].astype(jnp.float32), axis=-1) * (1.0 / hw)

    # conv_reduce (1x1 conv == matmul) + bias + ReLU -> (B, Cr).
    s = jnp.dot(pooled, w1t_ref[...], preferred_element_type=jnp.float32)
    s = jnp.maximum(s + b1_ref[...], 0.0)

    # conv_expand (1x1 conv == matmul) + bias -> (B, C).
    e = jnp.dot(s, w2t_ref[...], preferred_element_type=jnp.float32) + b2_ref[...]

    # hard_sigmoid gate: relu6(e + 3) / 6.
    gate = jnp.clip(e + 3.0, 0.0, 6.0) * (1.0 / 6.0)  # (B, C) f32

    # Re-read x (cheap VMEM load) instead of keeping the full block live above.
    o_ref[...] = (x_ref[...] * gate[:, :, None].astype(x_ref.dtype)).astype(o_ref.dtype)


def _se_kernel_nhwc(x_ref, w1t_ref, b1_ref, w2t_ref, b2_ref, o_ref):
    # Channels-last slab: x_ref: (B, HW, C) with C on the lane axis.
    hw = x_ref.shape[1]

    # Pool over the spatial (sublane) axis -> (B, C), f32.
    pooled = jnp.sum(x_ref[...].astype(jnp.float32), axis=1) * (1.0 / hw)

    s = jnp.dot(pooled, w1t_ref[...], preferred_element_type=jnp.float32)
    s = jnp.maximum(s + b1_ref[...], 0.0)
    e = jnp.dot(s, w2t_ref[...], preferred_element_type=jnp.float32) + b2_ref[...]
    gate = jnp.clip(e + 3.0, 0.0, 6.0) * (1.0 / 6.0)  # (B, C)

    o_ref[...] = (x_ref[...] * gate[:, None, :].astype(x_ref.dtype)).astype(o_ref.dtype)


# ----------------------------- wrapper ----------------------------------------


def _pick_samples_per_block(n, per_sample_bytes, *, num_cores=2):
    """Samples per grid step.

    Mem-bound kernel: small blocks (~4 MiB) already sit at the HBM roofline, so
    favor pipeline depth (>= 4 steps per TensorCore) over block size.  Tiny
    problems run as a single step so per-step overhead never dominates.
    """
    total = n * per_sample_bytes
    if total <= 2 * 1024 * 1024:          # tiny: one step (v5e/v6e micro-kernels)
        return n
    block_budget = 4 * 1024 * 1024        # per x block; in+out double-buffered => ~16 MiB
    b = max(1, block_budget // per_sample_bytes)
    target_steps = 4 * num_cores          # >= 4 steps per core when N allows
    b = min(b, max(1, n // target_steps))
    b = min(b, n)
    while n % b:                          # keep the grid exact (no ragged last block)
        b -= 1
    return b


def squeeze_excite(x_nchw, w1, b1, w2, b2):
    """x_nchw: (N, C, H, W).  w1: (Cr, C), b1: (Cr,), w2: (C, Cr), b2: (C,)."""
    N, C, H, W = x_nchw.shape
    Cr = w1.shape[0]
    HW = H * W
    itemsize = jnp.dtype(x_nchw.dtype).itemsize

    # Layout selection: keep HW on the lane axis when it is already lane-dense;
    # otherwise (deep layers: HW = 4..64, C = 128/256/512) use a channels-last
    # slab so loads/stores stay lane-dense and unmasked.
    use_channels_last = (HW % 128 != 0) and (C % 128 == 0)

    # Parameter math always in f32 (also correct for bf16 activations; avoids
    # slow emulated bf16 VALU paths on v5e).
    w1t = w1.T.astype(jnp.float32)          # (C, Cr)
    w2t = w2.T.astype(jnp.float32)          # (Cr, C)
    b1_2d = b1.reshape(1, Cr).astype(jnp.float32)
    b2_2d = b2.reshape(1, C).astype(jnp.float32)

    per_sample = C * HW * itemsize
    B = _pick_samples_per_block(N, per_sample)

    if use_channels_last:
        x = jnp.transpose(x_nchw.reshape(N, C, HW), (0, 2, 1))   # (N, HW, C)
        block = (B, HW, C)
        kernel = _se_kernel_nhwc
    else:
        x = x_nchw.reshape(N, C, HW)                             # free reshape
        block = (B, C, HW)
        kernel = _se_kernel_nchw

    # VMEM budget tied to the chosen block (in + out, double-buffered) + weights
    # + margin; capped so it is always safe on v7x's 64 MiB/TC VMEM.
    block_bytes = B * per_sample
    weight_bytes = (2 * C * Cr + C + Cr) * 4
    vmem_limit = 4 * block_bytes + weight_bytes + (4 << 20)
    vmem_limit = int(min(max(vmem_limit, 8 << 20), 32 << 20))

    cost = pl.CostEstimate(
        flops=4 * N * C * Cr + 3 * N * C * HW,
        transcendentals=0,
        bytes_accessed=2 * N * C * HW * itemsize + weight_bytes,
    )

    out = pl.pallas_call(
        kernel,
        out_shape=jax.ShapeDtypeStruct(x.shape, x.dtype),
        grid_spec=pltpu.PrefetchScalarGridSpec(
            num_scalar_prefetch=0,
            grid=(N // B,),
            in_specs=[
                pl.BlockSpec(block, lambda n: (n, 0, 0)),   # x: B samples per step
                pl.BlockSpec((C, Cr), lambda n: (0, 0)),    # conv_reduce weight (pre-T)
                pl.BlockSpec((1, Cr), lambda n: (0, 0)),    # conv_reduce bias
                pl.BlockSpec((Cr, C), lambda n: (0, 0)),    # conv_expand weight (pre-T)
                pl.BlockSpec((1, C), lambda n: (0, 0)),     # conv_expand bias
            ],
            out_specs=pl.BlockSpec(block, lambda n: (n, 0, 0)),
        ),
        compiler_params=pltpu.CompilerParams(
            dimension_semantics=("parallel",),
            vmem_limit_bytes=vmem_limit,
        ),
        cost_estimate=cost,
        # NOTE: no input_output_aliases — unless the caller donates x, XLA would
        # insert a defensive full copy (extra HBM pass on a bandwidth-bound op).
    )(x, w1t, b1_2d, w2t, b2_2d)

    if use_channels_last:
        out = jnp.transpose(out, (0, 2, 1))
    return out.reshape(N, C, H, W)


# ----------------------------- reference & test -------------------------------


def squeeze_excite_ref(x, w1, b1, w2, b2):
    """Pure-JAX reference matching the PyTorch module."""
    pooled = jnp.mean(x, axis=(2, 3), keepdims=True)                   # (N, C, 1, 1)
    s = jnp.einsum('rc,nchw->nrhw', w1, pooled) + b1[None, :, None, None]
    s = jnp.maximum(s, 0.0)
    e = jnp.einsum('cr,nrhw->nchw', w2, s) + b2[None, :, None, None]
    gate = jnp.clip(e + 3.0, 0.0, 6.0) / 6.0
    return x * gate


def _make_case(key, n, c, h, w, se_ratio=0.25):
    cr = int(c * se_ratio)
    k_x, k_w1, k_b1, k_w2, k_b2 = jax.random.split(key, 5)
    x = jax.random.normal(k_x, (n, c, h, w), dtype=jnp.float32)
    w1 = jax.random.normal(k_w1, (cr, c), dtype=jnp.float32) * 0.1
    b1 = jax.random.normal(k_b1, (cr,), dtype=jnp.float32) * 0.1
    w2 = jax.random.normal(k_w2, (c, cr), dtype=jnp.float32) * 0.1
    b2 = jax.random.normal(k_b2, (c,), dtype=jnp.float32) * 0.1
    return x, w1, b1, w2, b2


if __name__ == "__main__":
    key = jax.random.PRNGKey(0)
    k1, k2 = jax.random.split(key, 2)

    # Case 1: early-VGG-style shape, HW = 256 (multiple of 128) -> channels-first slab.
    x, w1, b1, w2, b2 = _make_case(k1, n=4, c=32, h=16, w=16)
    out = jax.block_until_ready(squeeze_excite(x, w1, b1, w2, b2))
    ref = jax.block_until_ready(squeeze_excite_ref(x, w1, b1, w2, b2))
    assert out.shape == x.shape
    assert jnp.allclose(out, ref, atol=1e-5, rtol=1e-5), "channels-first mismatch"

    # Case 2: deep-layer-style shape, HW = 16 < 128, C = 128 -> channels-last slab.
    x2, w12, b12, w22, b22 = _make_case(k2, n=2, c=128, h=4, w=4)
    out2 = jax.block_until_ready(squeeze_excite(x2, w12, b12, w22, b22))
    ref2 = jax.block_until_ready(squeeze_excite_ref(x2, w12, b12, w22, b22))
    assert out2.shape == x2.shape
    assert jnp.allclose(out2, ref2, atol=1e-5, rtol=1e-5), "channels-last mismatch"

    print("KERNEL_OK")
</pallas_src>

<mosaic_0001>
module attributes {stable_mosaic.version = 11 : i64} {
  func.func @_se_kernel_nchw(%arg0: i32, %arg1: memref<4x32x256xf32, #tpu.memory_space<vmem>>, %arg2: memref<32x8xf32, #tpu.memory_space<vmem>>, %arg3: memref<1x8xf32, #tpu.memory_space<vmem>>, %arg4: memref<8x32xf32, #tpu.memory_space<vmem>>, %arg5: memref<1x32xf32, #tpu.memory_space<vmem>>, %arg6: memref<4x32x256xf32, #tpu.memory_space<vmem>>) attributes {dimension_semantics = [#tpu.dimension_semantics<parallel>], iteration_bounds = array<i64: 1>, scalar_prefetch = 0 : i64, scratch_operands = 0 : i64, tpu.core_type = #tpu.core_type<tc>, window_params = [{transform_indices = @transform_0, window_bounds = array<i64: 4, 32, 256>}, {pipeline_mode = #tpu.pipeline_mode<synchronous>, transform_indices = @transform_1, window_bounds = array<i64: 32, 8>}, {pipeline_mode = #tpu.pipeline_mode<synchronous>, transform_indices = @transform_2, window_bounds = array<i64: 1, 8>}, {pipeline_mode = #tpu.pipeline_mode<synchronous>, transform_indices = @transform_3, window_bounds = array<i64: 8, 32>}, {pipeline_mode = #tpu.pipeline_mode<synchronous>, transform_indices = @transform_4, window_bounds = array<i64: 1, 32>}, {transform_indices = @transform_5, window_bounds = array<i64: 4, 32, 256>}]} {
    %c0 = arith.constant 0 : index
    %c0_0 = arith.constant 0 : index
    %c0_1 = arith.constant 0 : index
    %0 = vector.load %arg1[%c0, %c0_0, %c0_1] : memref<4x32x256xf32, #tpu.memory_space<vmem>>, vector<4x32x256xf32>
    %cst = arith.constant dense<0.000000e+00> : vector<4x32xf32>
    %1 = vector.multi_reduction <add>, %0, %cst [2] : vector<4x32x256xf32> to vector<4x32xf32>
    %cst_2 = arith.constant 3.906250e-03 : f32
    %2 = vector.broadcast %cst_2 : f32 to vector<4x32xf32>
    %3 = arith.mulf %1, %2 : vector<4x32xf32>
    %c0_3 = arith.constant 0 : index
    %c0_4 = arith.constant 0 : index
    %4 = vector.load %arg2[%c0_3, %c0_4] : memref<32x8xf32, #tpu.memory_space<vmem>>, vector<32x8xf32>
    %cst_5 = arith.constant dense<0.000000e+00> : vector<4x8xf32>
    %5 = tpu.matmul %3, %4, %cst_5 {dimension_numbers = #tpu.dot_dimension_numbers<[1], [0], [0], [1], [0, 0, 1, 1], [], []>} : vector<4x32xf32>, vector<32x8xf32>, vector<4x8xf32> -> vector<4x8xf32>
    %c0_6 = arith.constant 0 : index
    %c0_7 = arith.constant 0 : index
    %6 = vector.load %arg3[%c0_6, %c0_7] : memref<1x8xf32, #tpu.memory_space<vmem>>, vector<1x8xf32>
    %7 = vector.broadcast %6 : vector<1x8xf32> to vector<4x8xf32>
    %8 = arith.addf %5, %7 : vector<4x8xf32>
    %cst_8 = arith.constant 0.000000e+00 : f32
    %9 = vector.broadcast %cst_8 : f32 to vector<4x8xf32>
    %10 = arith.maximumf %8, %9 : vector<4x8xf32>
    %c0_9 = arith.constant 0 : index
    %c0_10 = arith.constant 0 : index
    %11 = vector.load %arg4[%c0_9, %c0_10] : memref<8x32xf32, #tpu.memory_space<vmem>>, vector<8x32xf32>
    %cst_11 = arith.constant dense<0.000000e+00> : vector<4x32xf32>
    %12 = tpu.matmul %10, %11, %cst_11 {dimension_numbers = #tpu.dot_dimension_numbers<[1], [0], [0], [1], [0, 0, 1, 1], [], []>} : vector<4x8xf32>, vector<8x32xf32>, vector<4x32xf32> -> vector<4x32xf32>
    %c0_12 = arith.constant 0 : index
    %c0_13 = arith.constant 0 : index
    %13 = vector.load %arg5[%c0_12, %c0_13] : memref<1x32xf32, #tpu.memory_space<vmem>>, vector<1x32xf32>
    %14 = vector.broadcast %13 : vector<1x32xf32> to vector<4x32xf32>
    %15 = arith.addf %12, %14 : vector<4x32xf32>
    %cst_14 = arith.constant 3.000000e+00 : f32
    %16 = vector.broadcast %cst_14 : f32 to vector<4x32xf32>
    %17 = arith.addf %15, %16 : vector<4x32xf32>
    %cst_15 = arith.constant 0.000000e+00 : f32
    %cst_16 = arith.constant 6.000000e+00 : f32
    %18 = vector.broadcast %cst_15 : f32 to vector<4x32xf32>
    %19 = arith.maximumf %18, %17 : vector<4x32xf32>
    %20 = vector.broadcast %cst_16 : f32 to vector<4x32xf32>
    %21 = arith.minimumf %20, %19 : vector<4x32xf32>
    %cst_17 = arith.constant 0.166666672 : f32
    %22 = vector.broadcast %cst_17 : f32 to vector<4x32xf32>
    %23 = arith.mulf %21, %22 : vector<4x32xf32>
    %c0_18 = arith.constant 0 : index
    %c0_19 = arith.constant 0 : index
    %c0_20 = arith.constant 0 : index
    %24 = vector.load %arg1[%c0_18, %c0_19, %c0_20] : memref<4x32x256xf32, #tpu.memory_space<vmem>>, vector<4x32x256xf32>
    %25 = vector.shape_cast %23 : vector<4x32xf32> to vector<4x32x1xf32>
    %26 = vector.broadcast %25 : vector<4x32x1xf32> to vector<4x32x256xf32>
    %27 = arith.mulf %24, %26 : vector<4x32x256xf32>
    %c0_21 = arith.constant 0 : index
    %c0_22 = arith.constant 0 : index
    %c0_23 = arith.constant 0 : index
    %28 = vector.load %arg6[%c0_21, %c0_22, %c0_23] : memref<4x32x256xf32, #tpu.memory_space<vmem>>, vector<4x32x256xf32>
    tpu.vector_store %arg6[%c0_21, %c0_22, %c0_23], %27 {strides = array<i32>} : memref<4x32x256xf32, #tpu.memory_space<vmem>>, vector<4x32x256xf32>,
    return
  }
  func.func @transform_0(%arg0: i32) -> (i32, i32, i32) {
    %c0_i32 = arith.constant 0 : i32
    %c0_i32_0 = arith.constant 0 : i32
    %c0_i32_1 = arith.constant 0 : i32
    return %arg0, %c0_i32, %c0_i32_0 : i32, i32, i32
  }
  func.func @transform_1(%arg0: i32) -> (i32, i32) {
    %c0_i32 = arith.constant 0 : i32
    %c0_i32_0 = arith.constant 0 : i32
    %c0_i32_1 = arith.constant 0 : i32
    return %c0_i32, %c0_i32_0 : i32, i32
  }
  func.func @transform_2(%arg0: i32) -> (i32, i32) {
    %c0_i32 = arith.constant 0 : i32
    %c0_i32_0 = arith.constant 0 : i32
    %c0_i32_1 = arith.constant 0 : i32
    return %c0_i32, %c0_i32_0 : i32, i32
  }
  func.func @transform_3(%arg0: i32) -> (i32, i32) {
    %c0_i32 = arith.constant 0 : i32
    %c0_i32_0 = arith.constant 0 : i32
    %c0_i32_1 = arith.constant 0 : i32
    return %c0_i32, %c0_i32_0 : i32, i32
  }
  func.func @transform_4(%arg0: i32) -> (i32, i32) {
    %c0_i32 = arith.constant 0 : i32
    %c0_i32_0 = arith.constant 0 : i32
    %c0_i32_1 = arith.constant 0 : i32
    return %c0_i32, %c0_i32_0 : i32, i32
  }
  func.func @transform_5(%arg0: i32) -> (i32, i32, i32) {
    %c0_i32 = arith.constant 0 : i32
    %c0_i32_0 = arith.constant 0 : i32
    %c0_i32_1 = arith.constant 0 : i32
    return %arg0, %c0_i32, %c0_i32_0 : i32, i32, i32
  }
}

</mosaic_0001>

<llo_original>
// kernel: tpu_custom_call.1
$region0: #{tpu_custom_call.1}
  #allocation0 [shape = 'u32[]', space=smem, size = 0x4, offset = 0x4, fixed_abs, tag = 'smem constant byte address 0x4 - core index']
  #allocation1 [shape = 'u32[144,128]{1,0:T(1,128)}', space=vmem, size = 0x12000, scoped, tag = 'internal scratch']
  %s0 = inlined_call_operand.hbm [shape: f32[4,32,256], index: 0, kind: input, shape index: {}]
  %s1 = inlined_call_operand.vmem [shape: f32[32,8], index: 1, kind: input, shape index: {}]
  %s2 = inlined_call_operand.vmem [shape: f32[1,8], index: 2, kind: input, shape index: {}]
  %s3 = inlined_call_operand.vmem [shape: f32[8,32], index: 3, kind: input, shape index: {}]
  %s4 = inlined_call_operand.vmem [shape: f32[1,32], index: 4, kind: input, shape index: {}]
  %s5 = inlined_call_operand.hbm [shape: f32[4,32,256], index: 5, kind: output, shape index: {}]
  %s6 = sld [smem:[#allocation0]]
  $region34: #{tpu_custom_call.1} parent=0
    _
  %s8 = ssub.s32 1, %s6
  %s9 = scalar_select 0, %s8, %s6
  $region1: #{tpu_custom_call.1} parent=0
    #allocation2 [shape = 'u8[131072]{0}', space=vmem, size = 0x20000, scoped, tag = 'input window, operand 0, single buffered']
    #allocation3 [shape = 's32[1]{0}', space=sflag, size = 0x4, scoped, tag = 'scoped memory for tpu_custom_call.1']
    #allocation4 [shape = 's32[1]{0}', space=sflag, size = 0x4, scoped, tag = 'scoped memory for tpu_custom_call.1']
    #allocation5 [shape = 'u8[131072]{0}', space=vmem, size = 0x20000, scoped, tag = 'output window, operand 0, single buffered']
    %10 = vsyncpa [#allocation3], 0
    %11 = vsyncpa [#allocation4], 0
    // Predicated region
    $region2: #{tpu_custom_call.1} parent=1 // pred_check
      _
    $region3: #{tpu_custom_call.1} parent=1 // pred_check_branch
      %13 = sbr.rel (0) target = $region5
    $region4: #{tpu_custom_call.1} parent=1 // pred_region
      %s15 = ssub.s32 4096, 4096
      %16 = vsyncadd [#allocation3], %s15
      %s17 = sshll.u32 [#allocation2], 4
      %s18 = int_to_ptr.vmem [resolvable:$true] %s17
      %23 = dma.hbm_to_vmem [thread:$0]  %s0, 4096, %s18, [#allocation3], 256, 256, 16
    $region5: #{tpu_custom_call.1} parent=1 // pred_fallthru
      _
    // Predicated region
    $region6: #{tpu_custom_call.1} parent=1 // pred_check
      _
    $region7: #{tpu_custom_call.1} parent=1 // pred_check_branch
      %25 = sbr.rel (0) target = $region9
    $region8: #{tpu_custom_call.1} parent=1 // pred_region
      _
    $region9: #{tpu_custom_call.1} parent=1 // pred_fallthru
      _
    // Predicated region
    $region10: #{tpu_custom_call.1} parent=1 // pred_check
      _
    $region11: #{tpu_custom_call.1} parent=1 // pred_check_branch
      %27 = sbr.rel (0) target = $region13
    $region12: #{tpu_custom_call.1} parent=1 // pred_region
      _
    $region13: #{tpu_custom_call.1} parent=1 // pred_fallthru
      _
    // Predicated region
    $region14: #{tpu_custom_call.1} parent=1 // pred_check
      _
    $region15: #{tpu_custom_call.1} parent=1 // pred_check_branch
      %29 = sbr.rel (0) target = $region17
    $region16: #{tpu_custom_call.1} parent=1 // pred_region
      _
    $region17: #{tpu_custom_call.1} parent=1 // pred_fallthru
      _
    // Predicated region
    $region18: #{tpu_custom_call.1} parent=1 // pred_check
      _
    $region19: #{tpu_custom_call.1} parent=1 // pred_check_branch
      %31 = sbr.rel (0) target = $region21
    $region20: #{tpu_custom_call.1} parent=1 // pred_region
      _
    $region21: #{tpu_custom_call.1} parent=1 // pred_fallthru
      _
    // Predicated region
    $region22: #{tpu_custom_call.1} parent=1 // pred_check
      _
    $region23: #{tpu_custom_call.1} parent=1 // pred_check_branch
      %33 = sbr.rel (0) target = $region25
    $region24: #{tpu_custom_call.1} parent=1 // pred_region
      %34 = dma.done [#allocation3], 4096
    $region25: #{tpu_custom_call.1} parent=1 // pred_fallthru
      _
    %v35 = vld [vmem:[#allocation2] sm:$0xff]
    %v36 = vld [vmem:[#allocation2 + $0x8] sm:$0xff]
    %v37 = vld [vmem:[#allocation2 + $0x10] sm:$0xff]
    %v38 = vld [vmem:[#allocation2 + $0x18] sm:$0xff]
    %v39 = vld [vmem:[#allocation2 + $0x20] sm:$0xff]
    %v40 = vld [vmem:[#allocation2 + $0x28] sm:$0xff]
    %v41 = vld [vmem:[#allocation2 + $0x30] sm:$0xff]
    %v42 = vld [vmem:[#allocation2 + $0x38] sm:$0xff]
    %v43 = vld [vmem:[#allocation2 + $0x40] sm:$0xff]
    %v44 = vld [vmem:[#allocation2 + $0x48] sm:$0xff]
    %v45 = vld [vmem:[#allocation2 + $0x50] sm:$0xff]
    %v46 = vld [vmem:[#allocation2 + $0x58] sm:$0xff]
    %v47 = vld [vmem:[#allocation2 + $0x60] sm:$0xff]
    %v48 = vld [vmem:[#allocation2 + $0x68] sm:$0xff]
    %v49 = vld [vmem:[#allocation2 + $0x70] sm:$0xff]
    %v50 = vld [vmem:[#allocation2 + $0x78] sm:$0xff]
    %v51 = vld [vmem:[#allocation2 + $0x80] sm:$0xff]
    %v52 = vld [vmem:[#allocation2 + $0x88] sm:$0xff]
    %v53 = vld [vmem:[#allocation2 + $0x90] sm:$0xff]
    %v54 = vld [vmem:[#allocation2 + $0x98] sm:$0xff]
    %v55 = vld [vmem:[#allocation2 + $0xa0] sm:$0xff]
    %v56 = vld [vmem:[#allocation2 + $0xa8] sm:$0xff]
    %v57 = vld [vmem:[#allocation2 + $0xb0] sm:$0xff]
    %v58 = vld [vmem:[#allocation2 + $0xb8] sm:$0xff]
    %v59 = vld [vmem:[#allocation2 + $0xc0] sm:$0xff]
    %v60 = vld [vmem:[#allocation2 + $0xc8] sm:$0xff]
    %v61 = vld [vmem:[#allocation2 + $0xd0] sm:$0xff]
    %v62 = vld [vmem:[#allocation2 + $0xd8] sm:$0xff]
    %v63 = vld [vmem:[#allocation2 + $0xe0] sm:$0xff]
    %v64 = vld [vmem:[#allocation2 + $0xe8] sm:$0xff]
    %v65 = vld [vmem:[#allocation2 + $0xf0] sm:$0xff]
    %v66 = vld [vmem:[#allocation2 + $0xf8] sm:$0xff]
    %v67 = vadd.f32 %v35, %v36
    %68 = vadd.xlane.f32.xlu0 %v67
    %v69 = vpop.xlane.xlu0 %68
    %v70 = vadd.f32 %v37, %v38
    %71 = vadd.xlane.f32.xlu0 %v70
    %v72 = vpop.xlane.xlu0 %71
    %v73 = vadd.f32 %v39, %v40
    %74 = vadd.xlane.f32.xlu0 %v73
    %v75 = vpop.xlane.xlu0 %74
    %v76 = vadd.f32 %v41, %v42
    %77 = vadd.xlane.f32.xlu0 %v76
    %v78 = vpop.xlane.xlu0 %77
    %v79 = vadd.f32 %v43, %v44
    %80 = vadd.xlane.f32.xlu0 %v79
    %v81 = vpop.xlane.xlu0 %80
    %v82 = vadd.f32 %v45, %v46
    %83 = vadd.xlane.f32.xlu0 %v82
    %v84 = vpop.xlane.xlu0 %83
    %v85 = vadd.f32 %v47, %v48
    %86 = vadd.xlane.f32.xlu0 %v85
    %v87 = vpop.xlane.xlu0 %86
    %v88 = vadd.f32 %v49, %v50
    %89 = vadd.xlane.f32.xlu0 %v88
    %v90 = vpop.xlane.xlu0 %89
    %v91 = vadd.f32 %v51, %v52
    %92 = vadd.xlane.f32.xlu0 %v91
    %v93 = vpop.xlane.xlu0 %92
    %v94 = vadd.f32 %v53, %v54
    %95 = vadd.xlane.f32.xlu0 %v94
    %v96 = vpop.xlane.xlu0 %95
    %v97 = vadd.f32 %v55, %v56
    %98 = vadd.xlane.f32.xlu0 %v97
    %v99 = vpop.xlane.xlu0 %98
    %v100 = vadd.f32 %v57, %v58
    %101 = vadd.xlane.f32.xlu0 %v100
    %v102 = vpop.xlane.xlu0 %101
    %v103 = vadd.f32 %v59, %v60
    %104 = vadd.xlane.f32.xlu0 %v103
    %v105 = vpop.xlane.xlu0 %104
    %v106 = vadd.f32 %v61, %v62
    %107 = vadd.xlane.f32.xlu0 %v106
    %v108 = vpop.xlane.xlu0 %107
    %v109 = vadd.f32 %v63, %v64
    %110 = vadd.xlane.f32.xlu0 %v109
    %v111 = vpop.xlane.xlu0 %110
    %v112 = vadd.f32 %v65, %v66
    %113 = vadd.xlane.f32.xlu0 %v112
    %v114 = vpop.xlane.xlu0 %113
    %v115 = vmul.f32 %v69, 0.00390625
    %v116 = vmul.f32 %v72, 0.00390625
    %v117 = vmul.f32 %v75, 0.00390625
    %v118 = vmul.f32 %v78, 0.00390625
    %v119 = vmul.f32 %v81, 0.00390625
    %v120 = vmul.f32 %v84, 0.00390625
    %v121 = vmul.f32 %v87, 0.00390625
    %v122 = vmul.f32 %v90, 0.00390625
    %v123 = vmul.f32 %v93, 0.00390625
    %v124 = vmul.f32 %v96, 0.00390625
    %v125 = vmul.f32 %v99, 0.00390625
    %v126 = vmul.f32 %v102, 0.00390625
    %v127 = vmul.f32 %v105, 0.00390625
    %v128 = vmul.f32 %v108, 0.00390625
    %v129 = vmul.f32 %v111, 0.00390625
    %v130 = vmul.f32 %v114, 0.00390625
    %v131 = vld [vmem:[%s1] sm:$0xff]
    %v132 = vld [vmem:[%s1 + $0x8] sm:$0xff]
    %v133 = vld [vmem:[%s1 + $0x10] sm:$0xff]
    %v134 = vld [vmem:[%s1 + $0x18] sm:$0xff]
    %v135 = vld [vmem:[%s2] sm:$0x1]
    %v137 = vlaneseq
    %v138 = vshrl.u32 %v137, 7
    %v139 = vsub.s32 0, %v138
    %v140 = vrot.slane %v135, %v139
    %v158 = vlaneseq
    %v159 = vand.u32 %v158, 127
    %v160 = vlaneseq
    %v161 = vshrl.u32 %v160, 7
    %v162 = vsub.s32 %v159, %v161
    %v163 = vrot.slane %v115, %v162
    %v164 = vadd.s32 %v159, 4294967288
    %v165 = vlaneseq
    %v166 = vshrl.u32 %v165, 7
    %v167 = vsub.s32 %v164, %v166
    %v168 = vrot.slane %v116, %v167
    %vm169 = vcmask 130112
    %v170 = vsel %vm169, %v168, %v163
    %v171 = vadd.s32 %v159, 4294967280
    %v172 = vlaneseq
    %v173 = vshrl.u32 %v172, 7
    %v174 = vsub.s32 %v171, %v173
    %v175 = vrot.slane %v117, %v174
    %vm176 = vcmask 195712
    %v177 = vsel %vm176, %v175, %v170
    %v178 = vadd.s32 %v159, 4294967272
    %v179 = vlaneseq
    %v180 = vshrl.u32 %v179, 7
    %v181 = vsub.s32 %v178, %v180
    %v182 = vrot.slane %v118, %v181
    %vm183 = vcmask 261312
    %v184 = vsel %vm183, %v182, %v177
    %v185 = vlaneseq
    %v186 = vshrl.u32 %v185, 7
    %v187 = vsub.s32 %v159, %v186
    %v188 = vrot.slane %v119, %v187
    %v189 = vlaneseq
    %v190 = vshrl.u32 %v189, 7
    %v191 = vsub.s32 %v164, %v190
    %v192 = vrot.slane %v120, %v191
    %v193 = vsel %vm169, %v192, %v188
    %v194 = vlaneseq
    %v195 = vshrl.u32 %v194, 7
    %v196 = vsub.s32 %v171, %v195
    %v197 = vrot.slane %v121, %v196
    %v198 = vsel %vm176, %v197, %v193
    %v199 = vlaneseq
    %v200 = vshrl.u32 %v199, 7
    %v201 = vsub.s32 %v178, %v200
    %v202 = vrot.slane %v122, %v201
    %v203 = vsel %vm183, %v202, %v198
    %v204 = vlaneseq
    %v205 = vshrl.u32 %v204, 7
    %v206 = vsub.s32 %v159, %v205
    %v207 = vrot.slane %v123, %v206
    %v208 = vlaneseq
    %v209 = vshrl.u32 %v208, 7
    %v210 = vsub.s32 %v164, %v209
    %v211 = vrot.slane %v124, %v210
    %v212 = vsel %vm169, %v211, %v207
    %v213 = vlaneseq
    %v214 = vshrl.u32 %v213, 7
    %v215 = vsub.s32 %v171, %v214
    %v216 = vrot.slane %v125, %v215
    %v217 = vsel %vm176, %v216, %v212
    %v218 = vlaneseq
    %v219 = vshrl.u32 %v218, 7
    %v220 = vsub.s32 %v178, %v219
    %v221 = vrot.slane %v126, %v220
    %v222 = vsel %vm183, %v221, %v217
    %v223 = vlaneseq
    %v224 = vshrl.u32 %v223, 7
    %v225 = vsub.s32 %v159, %v224
    %v226 = vrot.slane %v127, %v225
    %v227 = vlaneseq
    %v228 = vshrl.u32 %v227, 7
    %v229 = vsub.s32 %v164, %v228
    %v230 = vrot.slane %v128, %v229
    %v231 = vsel %vm169, %v230, %v226
    %v232 = vlaneseq
    %v233 = vshrl.u32 %v232, 7
    %v234 = vsub.s32 %v171, %v233
    %v235 = vrot.slane %v129, %v234
    %v236 = vsel %vm176, %v235, %v231
    %v237 = vlaneseq
    %v238 = vshrl.u32 %v237, 7
    %v239 = vsub.s32 %v178, %v238
    %v240 = vrot.slane %v130, %v239
    %v241 = vsel %vm183, %v240, %v236
    %vm242 = vcmask 1041409
    %v243 = vsel %vm242, %v203, %v184
    %vm244 = vcmask 1042434
    %v245 = vsel %vm244, %v222, %v243
    %vm246 = vcmask 1043459
    %v247 = vsel %vm246, %v241, %v245
    %vm248 = vcmask 261120
    %v249 = vsel %vm248, %v247, 0
    %251 = vmatprep.subr.mxu0 0.0
    %252 = vmatpush1.msra.mxu0 %v131
    %253 = vmatprep.subr.mxu0 0.0
    %254 = vmatpush1.msra.mxu0 %v132
    %255 = vmatprep.subr.mxu0 0.0
    %256 = vmatpush1.msra.mxu0 %v133
    %257 = vmatprep.subr.mxu0 0.0
    %258 = vmatpush1.msra.mxu0 %v134
    %259 = vmatprep.subr.mxu0 0.0
    %260 = vmatpush1.msra.mxu0 0.0
    %261 = vmatprep.subr.mxu0 0.0
    %262 = vmatpush1.msra.mxu0 0.0
    %263 = vmatprep.subr.mxu0 0.0
    %264 = vmatpush1.msra.mxu0 0.0
    %265 = vmatprep.subr.mxu0 0.0
    %266 = vmatpush1.msra.mxu0 0.0
    %267 = vmatprep.subr.mxu0 0.0
    %268 = vmatpush1.msra.mxu0 0.0
    %269 = vmatprep.subr.mxu0 0.0
    %270 = vmatpush1.msra.mxu0 0.0
    %271 = vmatprep.subr.mxu0 0.0
    %272 = vmatpush1.msra.mxu0 0.0
    %273 = vmatprep.subr.mxu0 0.0
    %274 = vmatpush1.msra.mxu0 0.0
    %275 = vmatprep.subr.mxu0 0.0
    %276 = vmatpush1.msra.mxu0 0.0
    %277 = vmatprep.subr.mxu0 0.0
    %278 = vmatpush1.msra.mxu0 0.0
    %279 = vmatprep.subr.mxu0 0.0
    %280 = vmatpush1.msra.mxu0 0.0
    %281 = vmatprep.subr.mxu0 0.0
    %282 = vmatpush1.msra.mxu0 0.0
    %283 = vmatprep.subr.mxu0 0.0
    %284 = vmatpush1.msra.mxu0 0.0
    %285 = vmatprep.subr.mxu0 0.0
    %286 = vmatpush1.msra.mxu0 0.0
    %287 = vmatprep.subr.mxu0 0.0
    %288 = vmatpush1.msra.mxu0 0.0
    %289 = vmatprep.subr.mxu0 0.0
    %290 = vmatpush1.msra.mxu0 0.0
    %291 = vmatprep.subr.mxu0 0.0
    %292 = vmatpush1.msra.mxu0 0.0
    %293 = vmatprep.subr.mxu0 0.0
    %294 = vmatpush1.msra.mxu0 0.0
    %295 = vmatprep.subr.mxu0 0.0
    %296 = vmatpush1.msra.mxu0 0.0
    %297 = vmatprep.subr.mxu0 0.0
    %298 = vmatpush1.msra.mxu0 0.0
    %299 = vmatprep.subr.mxu0 0.0
    %300 = vmatpush1.msra.mxu0 0.0
    %301 = vmatprep.subr.mxu0 0.0
    %302 = vmatpush1.msra.mxu0 0.0
    %303 = vmatprep.subr.mxu0 0.0
    %304 = vmatpush1.msra.mxu0 0.0
    %305 = vmatprep.subr.mxu0 0.0
    %306 = vmatpush1.msra.mxu0 0.0
    %307 = vmatprep.subr.mxu0 0.0
    %308 = vmatpush1.msra.mxu0 0.0
    %309 = vmatprep.subr.mxu0 0.0
    %310 = vmatpush1.msra.mxu0 0.0
    %311 = vmatprep.subr.mxu0 0.0
    %312 = vmatpush1.msra.mxu0 0.0
    %313 = vmatprep.subr.mxu0 0.0
    %314 = vmatpush1.msra.mxu0 0.0
    %315 = vmatprep.mubr.f32.mxu0 0.0
    %316 = vmatmul.mubr.f32.gmra.mrb[0].mxu0 %v249
    %v317 = vpop.f32.mrb[0].mxu0
    %v318 = vadd.f32 %v140, %v317
    %v319 = vpop.f32.mrb[0].mxu0
    %320 = vdwg.mxu0
    %v321 = vmax.f32 %v318, 0.0
    %v322 = vld [vmem:[%s3] sm:$0xff]
    %v323 = vld [vmem:[%s4] sm:$0x1]
    %v325 = vlaneseq
    %v326 = vshrl.u32 %v325, 7
    %v327 = vsub.s32 0, %v326
    %v328 = vrot.slane %v323, %v327
    %vm330 = vcmask 64512
    %v332 = vsel %vm330, %v321, 0
    %334 = vmatprep.subr.mxu0 0.0
    %335 = vmatpush1.msra.mxu0 %v322
    %336 = vmatprep.subr.mxu0 0.0
    %337 = vmatpush1.msra.mxu0 0.0
    %338 = vmatprep.subr.mxu0 0.0
    %339 = vmatpush1.msra.mxu0 0.0
    %340 = vmatprep.subr.mxu0 0.0
    %341 = vmatpush1.msra.mxu0 0.0
    %342 = vmatprep.subr.mxu0 0.0
    %343 = vmatpush1.msra.mxu0 0.0
    %344 = vmatprep.subr.mxu0 0.0
    %345 = vmatpush1.msra.mxu0 0.0
    %346 = vmatprep.subr.mxu0 0.0
    %347 = vmatpush1.msra.mxu0 0.0
    %348 = vmatprep.subr.mxu0 0.0
    %349 = vmatpush1.msra.mxu0 0.0
    %350 = vmatprep.subr.mxu0 0.0
    %351 = vmatpush1.msra.mxu0 0.0
    %352 = vmatprep.subr.mxu0 0.0
    %353 = vmatpush1.msra.mxu0 0.0
    %354 = vmatprep.subr.mxu0 0.0
    %355 = vmatpush1.msra.mxu0 0.0
    %356 = vmatprep.subr.mxu0 0.0
    %357 = vmatpush1.msra.mxu0 0.0
    %358 = vmatprep.subr.mxu0 0.0
    %359 = vmatpush1.msra.mxu0 0.0
    %360 = vmatprep.subr.mxu0 0.0
    %361 = vmatpush1.msra.mxu0 0.0
    %362 = vmatprep.subr.mxu0 0.0
    %363 = vmatpush1.msra.mxu0 0.0
    %364 = vmatprep.subr.mxu0 0.0
    %365 = vmatpush1.msra.mxu0 0.0
    %366 = vmatprep.subr.mxu0 0.0
    %367 = vmatpush1.msra.mxu0 0.0
    %368 = vmatprep.subr.mxu0 0.0
    %369 = vmatpush1.msra.mxu0 0.0
    %370 = vmatprep.subr.mxu0 0.0
    %371 = vmatpush1.msra.mxu0 0.0
    %372 = vmatprep.subr.mxu0 0.0
    %373 = vmatpush1.msra.mxu0 0.0
    %374 = vmatprep.subr.mxu0 0.0
    %375 = vmatpush1.msra.mxu0 0.0
    %376 = vmatprep.subr.mxu0 0.0
    %377 = vmatpush1.msra.mxu0 0.0
    %378 = vmatprep.subr.mxu0 0.0
    %379 = vmatpush1.msra.mxu0 0.0
    %380 = vmatprep.subr.mxu0 0.0
    %381 = vmatpush1.msra.mxu0 0.0
    %382 = vmatprep.subr.mxu0 0.0
    %383 = vmatpush1.msra.mxu0 0.0
    %384 = vmatprep.subr.mxu0 0.0
    %385 = vmatpush1.msra.mxu0 0.0
    %386 = vmatprep.subr.mxu0 0.0
    %387 = vmatpush1.msra.mxu0 0.0
    %388 = vmatprep.subr.mxu0 0.0
    %389 = vmatpush1.msra.mxu0 0.0
    %390 = vmatprep.subr.mxu0 0.0
    %391 = vmatpush1.msra.mxu0 0.0
    %392 = vmatprep.subr.mxu0 0.0
    %393 = vmatpush1.msra.mxu0 0.0
    %394 = vmatprep.subr.mxu0 0.0
    %395 = vmatpush1.msra.mxu0 0.0
    %396 = vmatprep.subr.mxu0 0.0
    %397 = vmatpush1.msra.mxu0 0.0
    %398 = vmatprep.mubr.f32.mxu0 0.0
    %399 = vmatmul.mubr.f32.gmra.mrb[0].mxu0 %v332
    %v400 = vpop.f32.mrb[0].mxu0
    %v401 = vadd.f32 %v328, %v400
    %v402 = vpop.f32.mrb[0].mxu0
    %403 = vdwg.mxu0
    %v404 = vadd.f32 %v401, 3.0
    %v405 = vmax.f32 %v404, 0.0
    %v406 = vmin.f32 %v405, 6.0
    %v407 = vmul.f32 %v406, 0.16666667
    %v408 = vlaneseq
    %v409 = vshrl.u32 %v408, 7
    %v410 = vsub.s32 0, %v409
    %v411 = vrot.slane %v407, %v410
    %413 = vbcast.lane.b32.xlu0 %v411, 256
    %v414 = vpop.permute.xlu0 %413
    %s416 = sor.u32 256, 8
    %417 = vbcast.lane.b32.xlu0 %v411, %s416
    %v418 = vpop.permute.xlu0 %417
    %s420 = sor.u32 256, 16
    %421 = vbcast.lane.b32.xlu0 %v411, %s420
    %v422 = vpop.permute.xlu0 %421
    %s424 = sor.u32 256, 24
    %425 = vbcast.lane.b32.xlu0 %v411, %s424
    %v426 = vpop.permute.xlu0 %425
    %v427 = vlaneseq
    %v428 = vshrl.u32 %v427, 7
    %v429 = vsub.s32 1, %v428
    %v430 = vrot.slane %v407, %v429
    %432 = vbcast.lane.b32.xlu0 %v430, 256
    %v433 = vpop.permute.xlu0 %432
    %s435 = sor.u32 256, 8
    %436 = vbcast.lane.b32.xlu0 %v430, %s435
    %v437 = vpop.permute.xlu0 %436
    %s439 = sor.u32 256, 16
    %440 = vbcast.lane.b32.xlu0 %v430, %s439
    %v441 = vpop.permute.xlu0 %440
    %s443 = sor.u32 256, 24
    %444 = vbcast.lane.b32.xlu0 %v430, %s443
    %v445 = vpop.permute.xlu0 %444
    %v446 = vlaneseq
    %v447 = vshrl.u32 %v446, 7
    %v448 = vsub.s32 2, %v447
    %v449 = vrot.slane %v407, %v448
    %451 = vbcast.lane.b32.xlu0 %v449, 256
    %v452 = vpop.permute.xlu0 %451
    %s454 = sor.u32 256, 8
    %455 = vbcast.lane.b32.xlu0 %v449, %s454
    %v456 = vpop.permute.xlu0 %455
    %s458 = sor.u32 256, 16
    %459 = vbcast.lane.b32.xlu0 %v449, %s458
    %v460 = vpop.permute.xlu0 %459
    %s462 = sor.u32 256, 24
    %463 = vbcast.lane.b32.xlu0 %v449, %s462
    %v464 = vpop.permute.xlu0 %463
    %v465 = vlaneseq
    %v466 = vshrl.u32 %v465, 7
    %v467 = vsub.s32 3, %v466
    %v468 = vrot.slane %v407, %v467
    %470 = vbcast.lane.b32.xlu0 %v468, 256
    %v471 = vpop.permute.xlu0 %470
    %s473 = sor.u32 256, 8
    %474 = vbcast.lane.b32.xlu0 %v468, %s473
    %v475 = vpop.permute.xlu0 %474
    %s477 = sor.u32 256, 16
    %478 = vbcast.lane.b32.xlu0 %v468, %s477
    %v479 = vpop.permute.xlu0 %478
    %s481 = sor.u32 256, 24
    %482 = vbcast.lane.b32.xlu0 %v468, %s481
    %v483 = vpop.permute.xlu0 %482
    %v484 = vmul.f32 %v35, %v414
    %v485 = vmul.f32 %v36, %v414
    %v486 = vmul.f32 %v37, %v418
    %v487 = vmul.f32 %v38, %v418
    %v488 = vmul.f32 %v39, %v422
    %v489 = vmul.f32 %v40, %v422
    %v490 = vmul.f32 %v41, %v426
    %v491 = vmul.f32 %v42, %v426
    %v492 = vmul.f32 %v43, %v433
    %v493 = vmul.f32 %v44, %v433
    %v494 = vmul.f32 %v45, %v437
    %v495 = vmul.f32 %v46, %v437
    %v496 = vmul.f32 %v47, %v441
    %v497 = vmul.f32 %v48, %v441
    %v498 = vmul.f32 %v49, %v445
    %v499 = vmul.f32 %v50, %v445
    %v500 = vmul.f32 %v51, %v452
    %v501 = vmul.f32 %v52, %v452
    %v502 = vmul.f32 %v53, %v456
    %v503 = vmul.f32 %v54, %v456
    %v504 = vmul.f32 %v55, %v460
    %v505 = vmul.f32 %v56, %v460
    %v506 = vmul.f32 %v57, %v464
    %v507 = vmul.f32 %v58, %v464
    %v508 = vmul.f32 %v59, %v471
    %v509 = vmul.f32 %v60, %v471
    %v510 = vmul.f32 %v61, %v475
    %v511 = vmul.f32 %v62, %v475
    %v512 = vmul.f32 %v63, %v479
    %v513 = vmul.f32 %v64, %v479
    %v514 = vmul.f32 %v65, %v483
    %v515 = vmul.f32 %v66, %v483
    %516 = vst [vmem:[#allocation5] sm:$0xff] %v484
    %517 = vst [vmem:[#allocation5 + $0x8] sm:$0xff] %v485
    %518 = vst [vmem:[#allocation5 + $0x10] sm:$0xff] %v486
    %519 = vst [vmem:[#allocation5 + $0x18] sm:$0xff] %v487
    %520 = vst [vmem:[#allocation5 + $0x20] sm:$0xff] %v488
    %521 = vst [vmem:[#allocation5 + $0x28] sm:$0xff] %v489
    %522 = vst [vmem:[#allocation5 + $0x30] sm:$0xff] %v490
    %523 = vst [vmem:[#allocation5 + $0x38] sm:$0xff] %v491
    %524 = vst [vmem:[#allocation5 + $0x40] sm:$0xff] %v492
    %525 = vst [vmem:[#allocation5 + $0x48] sm:$0xff] %v493
    %526 = vst [vmem:[#allocation5 + $0x50] sm:$0xff] %v494
    %527 = vst [vmem:[#allocation5 + $0x58] sm:$0xff] %v495
    %528 = vst [vmem:[#allocation5 + $0x60] sm:$0xff] %v496
    %529 = vst [vmem:[#allocation5 + $0x68] sm:$0xff] %v497
    %530 = vst [vmem:[#allocation5 + $0x70] sm:$0xff] %v498
    %531 = vst [vmem:[#allocation5 + $0x78] sm:$0xff] %v499
    %532 = vst [vmem:[#allocation5 + $0x80] sm:$0xff] %v500
    %533 = vst [vmem:[#allocation5 + $0x88] sm:$0xff] %v501
    %534 = vst [vmem:[#allocation5 + $0x90] sm:$0xff] %v502
    %535 = vst [vmem:[#allocation5 + $0x98] sm:$0xff] %v503
    %536 = vst [vmem:[#allocation5 + $0xa0] sm:$0xff] %v504
    %537 = vst [vmem:[#allocation5 + $0xa8] sm:$0xff] %v505
    %538 = vst [vmem:[#allocation5 + $0xb0] sm:$0xff] %v506
    %539 = vst [vmem:[#allocation5 + $0xb8] sm:$0xff] %v507
    %540 = vst [vmem:[#allocation5 + $0xc0] sm:$0xff] %v508
    %541 = vst [vmem:[#allocation5 + $0xc8] sm:$0xff] %v509
    %542 = vst [vmem:[#allocation5 + $0xd0] sm:$0xff] %v510
    %543 = vst [vmem:[#allocation5 + $0xd8] sm:$0xff] %v511
    %544 = vst [vmem:[#allocation5 + $0xe0] sm:$0xff] %v512
    %545 = vst [vmem:[#allocation5 + $0xe8] sm:$0xff] %v513
    %546 = vst [vmem:[#allocation5 + $0xf0] sm:$0xff] %v514
    %547 = vst [vmem:[#allocation5 + $0xf8] sm:$0xff] %v515
    // Predicated region
    $region26: #{tpu_custom_call.1} parent=1 // pred_check
      _
    $region27: #{tpu_custom_call.1} parent=1 // pred_check_branch
      %549 = sbr.rel (0) target = $region29
    $region28: #{tpu_custom_call.1} parent=1 // pred_region
      %s551 = ssub.s32 4096, 4096
      %552 = vsyncadd [#allocation4], %s551
      %s553 = sshll.u32 [#allocation5], 4
      %s554 = int_to_ptr.vmem [resolvable:$true] %s553
      %559 = dma.vmem_to_hbm [thread:$0]  %s554, 4096, %s5, [#allocation4], 256, 256, 16
    $region29: #{tpu_custom_call.1} parent=1 // pred_fallthru
      _
    // Predicated region
    $region30: #{tpu_custom_call.1} parent=1 // pred_check
      _
    $region31: #{tpu_custom_call.1} parent=1 // pred_check_branch
      %561 = sbr.rel (0) target = $region33
    $region32: #{tpu_custom_call.1} parent=1 // pred_region
      %562 = dma.done [#allocation4], 4096
    $region33: #{tpu_custom_call.1} parent=1 // pred_fallthru
      _
    %563 = vsyncpa [#allocation3], 1
    %564 = vsyncpa [#allocation4], 1

</llo_original>
